<compile_context>
chip_gen: v5e
topology: v5e:2x2
jax: 0.10.0
libtpu: 0.0.40
codegen_flags: <defaults>
</compile_context>

<pallas_src>
import functools
import math

import jax
import jax.numpy as jnp
from jax.experimental import pallas as pl
from jax.experimental.pallas import tpu as pltpu


def _round_up(x, m):
    return ((x + m - 1) // m) * m


def _patch_embed_kernel(p_ref, w_ref, b_ref, g_ref, beta_ref, o_ref, *, e_true):
    """Fused (im2col-matmul + bias + LayerNorm) for one M tile.

    p_ref:    (tm, K)     im2col patches tile   (K = kh*kw*C, tap-major order)
    w_ref:    (K, E_pad)  projection weight, zero-padded to lane-dense E_pad
    b_ref:    (1, E_pad)  conv bias   (zero-padded)
    g_ref:    (1, E_pad)  LN weight   (zero-padded)
    beta_ref: (1, E_pad)  LN bias     (zero-padded)
    o_ref:    (tm, E_pad) output tile
    """
    # Projection on the MXU; always accumulate in f32.
    y = jnp.dot(p_ref[...], w_ref[...], preferred_element_type=jnp.float32)
    y = y + b_ref[...].astype(jnp.float32)

    e_pad = y.shape[-1]
    if e_pad == e_true:
        # No lane padding: plain LayerNorm (PyTorch semantics, biased var).
        mean = jnp.mean(y, axis=-1, keepdims=True)
        centered = y - mean
        var = jnp.mean(centered * centered, axis=-1, keepdims=True)
    else:
        # Lane-padded embedding dim: reduce only over the first e_true lanes.
        lane = jax.lax.broadcasted_iota(jnp.int32, y.shape, 1)
        mask = lane < e_true
        inv_e = 1.0 / float(e_true)
        y_masked = jnp.where(mask, y, 0.0)
        mean = jnp.sum(y_masked, axis=-1, keepdims=True) * inv_e
        centered = jnp.where(mask, y - mean, 0.0)
        var = jnp.sum(centered * centered, axis=-1, keepdims=True) * inv_e

    y_hat = centered * jax.lax.rsqrt(var + 1e-5)
    out = y_hat * g_ref[...].astype(jnp.float32) + beta_ref[...].astype(jnp.float32)
    o_ref[...] = out.astype(o_ref.dtype)


def _im2col_nhwc(x_nhwc, kh, kw, stride, pad_h, pad_w):
    """Overlapping patches from an NHWC tensor.

    Returns (B*Ho*Wo, kh*kw*C), Ho, Wo.  Feature order is tap-major (i, j, C),
    so the kh*kw taps are a cheap last-axis concat (no large transpose).
    """
    B, H, W, C = x_nhwc.shape
    x_pad = jnp.pad(x_nhwc, ((0, 0), (pad_h, pad_h), (pad_w, pad_w), (0, 0)))
    Hp, Wp = H + 2 * pad_h, W + 2 * pad_w
    Ho = (Hp - kh) // stride + 1
    Wo = (Wp - kw) // stride + 1

    slabs = []
    for i in range(kh):
        for j in range(kw):
            slab = x_pad[:, i:i + stride * Ho:stride, j:j + stride * Wo:stride, :]
            slabs.append(slab)  # (B, Ho, Wo, C)
    patches = jnp.concatenate(slabs, axis=-1)        # (B, Ho, Wo, kh*kw*C)
    patches = patches.reshape(B * Ho * Wo, kh * kw * C)
    return patches, Ho, Wo


def _choose_tile_m(M, K, E_pad, compute_itemsize, out_itemsize, tile_m_cap,
                   vmem_budget_bytes):
    """Largest M tile (multiple of 16) whose double-buffered footprint fits."""
    weight_bytes = K * E_pad * compute_itemsize
    per_row = 2 * K * compute_itemsize + 2 * E_pad * out_itemsize
    avail = max(vmem_budget_bytes - weight_bytes, per_row * 16)
    tm = min(tile_m_cap, avail // per_row)
    tm = max(16, (int(tm) // 16) * 16)
    tm = min(tm, _round_up(M, 16))
    return int(tm)


def overlap_patch_embed(x, conv_w, conv_b, ln_w, ln_b, *, stride,
                        compute_dtype=jnp.bfloat16, tile_m=2048):
    """Forward pass of OverlapPatchEmbed.

    x:      (B, C, H, W)   NCHW input
    conv_w: (E, C, kh, kw) PyTorch Conv2d weight layout
    conv_b: (E,)           Conv2d bias
    ln_w:   (E,)           LayerNorm weight
    ln_b:   (E,)           LayerNorm bias
    compute_dtype: dtype for the matmul operands (accumulation stays f32).
    Returns (tokens, Ho, Wo) with tokens of shape (B, Ho*Wo, E).
    """
    B, C, H, W = x.shape
    E, _, kh, kw = conv_w.shape
    pad_h, pad_w = kh // 2, kw // 2

    if compute_dtype is None:
        compute_dtype = x.dtype

    # TODO(synk): fold the kh*kw tap extraction into the kernel (manual strided
    # DMA of the padded input) to eliminate the im2col HBM round trip; cross-
    # lane repacking of narrow-C rows makes this a poor fit for BlockSpec, so
    # im2col remains XLA glue for now.
    # NHWC view + compute-dtype cast BEFORE im2col: one small input transpose,
    # and the materialized patch buffer is already bf16 (half the HBM bytes).
    x_nhwc = jnp.transpose(x, (0, 2, 3, 1)).astype(compute_dtype)
    patches, Ho, Wo = _im2col_nhwc(x_nhwc, kh, kw, stride, pad_h, pad_w)
    M, K = patches.shape

    # Lane-dense embedding dim (>=128, multiple of 128): unmasked output
    # stores and full-width reductions.
    E_pad = _round_up(max(E, 128), 128)

    out_dtype = x.dtype
    tm = _choose_tile_m(
        M, K, E_pad,
        compute_itemsize=jnp.dtype(compute_dtype).itemsize,
        out_itemsize=jnp.dtype(out_dtype).itemsize,
        tile_m_cap=tile_m,
        vmem_budget_bytes=20 * 1024 * 1024,   # leave headroom under the limit
    )
    M_pad = _round_up(M, tm)
    if M_pad != M:
        patches = jnp.pad(patches, ((0, M_pad - M), (0, 0)))

    # Weight: (E, C, kh, kw) -> (kh, kw, C, E) -> (K, E_pad), matching the
    # tap-major im2col feature order; zero-padded columns.
    w_mat = jnp.transpose(conv_w, (2, 3, 1, 0)).reshape(K, E)
    w_mat = jnp.pad(w_mat, ((0, 0), (0, E_pad - E))).astype(compute_dtype)
    b_row = jnp.pad(conv_b.reshape(1, E), ((0, 0), (0, E_pad - E))).astype(jnp.float32)
    g_row = jnp.pad(ln_w.reshape(1, E), ((0, 0), (0, E_pad - E))).astype(jnp.float32)
    beta_row = jnp.pad(ln_b.reshape(1, E), ((0, 0), (0, E_pad - E))).astype(jnp.float32)

    kernel = functools.partial(_patch_embed_kernel, e_true=E)

    out = pl.pallas_call(
        kernel,
        out_shape=jax.ShapeDtypeStruct((M_pad, E_pad), out_dtype),
        grid_spec=pltpu.PrefetchScalarGridSpec(
            num_scalar_prefetch=0,
            grid=(M_pad // tm,),
            in_specs=[
                pl.BlockSpec((tm, K), lambda i: (i, 0)),        # streamed
                pl.BlockSpec((K, E_pad), lambda i: (0, 0)),     # resident
                pl.BlockSpec((1, E_pad), lambda i: (0, 0)),     # resident
                pl.BlockSpec((1, E_pad), lambda i: (0, 0)),     # resident
                pl.BlockSpec((1, E_pad), lambda i: (0, 0)),     # resident
            ],
            out_specs=pl.BlockSpec((tm, E_pad), lambda i: (i, 0)),
        ),
        compiler_params=pltpu.CompilerParams(
            dimension_semantics=("parallel",),       # v7x: shard rows over 2 TCs
            vmem_limit_bytes=32 * 1024 * 1024,       # safe on v5e/v6e/v7x
        ),
    )(patches, w_mat, b_row, g_row, beta_row)

    tokens = out[:M, :E].reshape(B, Ho * Wo, E)
    return tokens, Ho, Wo


def _reference(x, conv_w, conv_b, ln_w, ln_b, *, stride):
    """Pure-JAX reference (lax conv + layernorm) for a correctness check."""
    kh, kw = conv_w.shape[2], conv_w.shape[3]
    y = jax.lax.conv_general_dilated(
        x, conv_w,
        window_strides=(stride, stride),
        padding=((kh // 2, kh // 2), (kw // 2, kw // 2)),
        dimension_numbers=("NCHW", "OIHW", "NCHW"),
    ) + conv_b[None, :, None, None]
    B, E, Ho, Wo = y.shape
    y = y.reshape(B, E, Ho * Wo).transpose(0, 2, 1)  # (B, N, E)
    mean = jnp.mean(y, axis=-1, keepdims=True)
    var = jnp.mean((y - mean) ** 2, axis=-1, keepdims=True)
    y = (y - mean) / jnp.sqrt(var + 1e-5) * ln_w + ln_b
    return y, Ho, Wo


if __name__ == "__main__":
    # Small, module-consistent config: patch_size=7, stride=4, in_chans=4,
    # embed_dim=32, 16x16 image, batch=2.
    B, C, H, W = 2, 4, 16, 16
    patch_size, stride, embed_dim = 7, 4, 32

    key = jax.random.PRNGKey(0)
    kx, kw_ = jax.random.split(key)

    x = jax.random.normal(kx, (B, C, H, W), dtype=jnp.float32)

    # Deterministic parameter init mirroring the module's _init_weights:
    # Conv2d: normal(0, sqrt(2/fan_out)), bias=0; LayerNorm: weight=1, bias=0.
    fan_out = patch_size * patch_size * embed_dim
    conv_w = (jax.random.normal(kw_, (embed_dim, C, patch_size, patch_size),
                                dtype=jnp.float32)
              * math.sqrt(2.0 / fan_out))
    conv_b = jnp.zeros((embed_dim,), dtype=jnp.float32)
    ln_w = jnp.ones((embed_dim,), dtype=jnp.float32)
    ln_b = jnp.zeros((embed_dim,), dtype=jnp.float32)

    ref_tokens, ref_H, ref_W = _reference(x, conv_w, conv_b, ln_w, ln_b,
                                          stride=stride)

    # 1) f32 compute path: tight check against the lax reference.
    fwd_f32 = jax.jit(functools.partial(overlap_patch_embed, stride=stride,
                                        compute_dtype=jnp.float32))
    tok_f32, Ho, Wo = fwd_f32(x, conv_w, conv_b, ln_w, ln_b)
    tok_f32 = jax.block_until_ready(tok_f32)
    assert tok_f32.shape == (B, Ho * Wo, embed_dim)
    assert (Ho, Wo) == (ref_H, ref_W)
    assert jnp.allclose(tok_f32, ref_tokens, atol=1e-4, rtol=1e-4)

    # 2) bf16 compute path (default / production): looser tolerance.
    fwd_bf16 = jax.jit(functools.partial(overlap_patch_embed, stride=stride,
                                         compute_dtype=jnp.bfloat16))
    tok_bf16, _, _ = fwd_bf16(x, conv_w, conv_b, ln_w, ln_b)
    tok_bf16 = jax.block_until_ready(tok_bf16)
    assert tok_bf16.shape == (B, Ho * Wo, embed_dim)
    assert jnp.allclose(tok_bf16, ref_tokens, atol=5e-2, rtol=5e-2)

    print("KERNEL_OK")
</pallas_src>

<mosaic_0001>
module attributes {stable_mosaic.version = 11 : i64} {
  func.func @_patch_embed_kernel(%arg0: i32, %arg1: memref<32x196xf32, #tpu.memory_space<vmem>>, %arg2: memref<196x128xf32, #tpu.memory_space<vmem>>, %arg3: memref<1x128xf32, #tpu.memory_space<vmem>>, %arg4: memref<1x128xf32, #tpu.memory_space<vmem>>, %arg5: memref<1x128xf32, #tpu.memory_space<vmem>>, %arg6: memref<32x128xf32, #tpu.memory_space<vmem>>) attributes {dimension_semantics = [#tpu.dimension_semantics<parallel>], iteration_bounds = array<i64: 1>, scalar_prefetch = 0 : i64, scratch_operands = 0 : i64, tpu.core_type = #tpu.core_type<tc>, window_params = [{transform_indices = @transform_0, window_bounds = array<i64: 32, 196>}, {pipeline_mode = #tpu.pipeline_mode<synchronous>, transform_indices = @transform_1, window_bounds = array<i64: 196, 128>}, {pipeline_mode = #tpu.pipeline_mode<synchronous>, transform_indices = @transform_2, window_bounds = array<i64: 1, 128>}, {pipeline_mode = #tpu.pipeline_mode<synchronous>, transform_indices = @transform_3, window_bounds = array<i64: 1, 128>}, {pipeline_mode = #tpu.pipeline_mode<synchronous>, transform_indices = @transform_4, window_bounds = array<i64: 1, 128>}, {transform_indices = @transform_5, window_bounds = array<i64: 32, 128>}]} {
    %c0 = arith.constant 0 : index
    %c0_0 = arith.constant 0 : index
    %0 = vector.load %arg1[%c0, %c0_0] : memref<32x196xf32, #tpu.memory_space<vmem>>, vector<32x196xf32>
    %c0_1 = arith.constant 0 : index
    %c0_2 = arith.constant 0 : index
    %1 = vector.load %arg2[%c0_1, %c0_2] : memref<196x128xf32, #tpu.memory_space<vmem>>, vector<196x128xf32>
    %cst = arith.constant dense<0.000000e+00> : vector<32x128xf32>
    %2 = tpu.matmul %0, %1, %cst {dimension_numbers = #tpu.dot_dimension_numbers<[1], [0], [0], [1], [0, 0, 1, 1], [], []>} : vector<32x196xf32>, vector<196x128xf32>, vector<32x128xf32> -> vector<32x128xf32>
    %c0_3 = arith.constant 0 : index
    %c0_4 = arith.constant 0 : index
    %3 = vector.load %arg3[%c0_3, %c0_4] : memref<1x128xf32, #tpu.memory_space<vmem>>, vector<1x128xf32>
    %4 = vector.broadcast %3 : vector<1x128xf32> to vector<32x128xf32>
    %5 = arith.addf %2, %4 : vector<32x128xf32>
    %6 = tpu.iota {dimensions = array<i32: 1>} : vector<32x128xi32>
    %c32_i32 = arith.constant 32 : i32
    %7 = vector.broadcast %c32_i32 : i32 to vector<32x128xi32>
    %8 = arith.cmpi slt, %6, %7 : vector<32x128xi32>
    %cst_5 = arith.constant 0.000000e+00 : f32
    %9 = vector.broadcast %cst_5 : f32 to vector<32x128xf32>
    %10 = arith.select %8, %5, %9 : vector<32x128xi1>, vector<32x128xf32>
    %cst_6 = arith.constant dense<0.000000e+00> : vector<32xf32>
    %11 = vector.multi_reduction <add>, %10, %cst_6 [1] : vector<32x128xf32> to vector<32xf32>
    %12 = vector.shape_cast %11 : vector<32xf32> to vector<32x1xf32>
    %cst_7 = arith.constant 3.125000e-02 : f32
    %13 = vector.broadcast %cst_7 : f32 to vector<32x1xf32>
    %14 = arith.mulf %12, %13 : vector<32x1xf32>
    %15 = vector.broadcast %14 : vector<32x1xf32> to vector<32x128xf32>
    %16 = arith.subf %5, %15 : vector<32x128xf32>
    %cst_8 = arith.constant 0.000000e+00 : f32
    %17 = vector.broadcast %cst_8 : f32 to vector<32x128xf32>
    %18 = arith.select %8, %16, %17 : vector<32x128xi1>, vector<32x128xf32>
    %19 = arith.mulf %18, %18 : vector<32x128xf32>
    %cst_9 = arith.constant dense<0.000000e+00> : vector<32xf32>
    %20 = vector.multi_reduction <add>, %19, %cst_9 [1] : vector<32x128xf32> to vector<32xf32>
    %21 = vector.shape_cast %20 : vector<32xf32> to vector<32x1xf32>
    %cst_10 = arith.constant 3.125000e-02 : f32
    %22 = vector.broadcast %cst_10 : f32 to vector<32x1xf32>
    %23 = arith.mulf %21, %22 : vector<32x1xf32>
    %cst_11 = arith.constant 9.99999974E-6 : f32
    %24 = vector.broadcast %cst_11 : f32 to vector<32x1xf32>
    %25 = arith.addf %23, %24 : vector<32x1xf32>
    %26 = math.rsqrt %25 : vector<32x1xf32>
    %27 = vector.broadcast %26 : vector<32x1xf32> to vector<32x128xf32>
    %28 = arith.mulf %18, %27 : vector<32x128xf32>
    %c0_12 = arith.constant 0 : index
    %c0_13 = arith.constant 0 : index
    %29 = vector.load %arg4[%c0_12, %c0_13] : memref<1x128xf32, #tpu.memory_space<vmem>>, vector<1x128xf32>
    %30 = vector.broadcast %29 : vector<1x128xf32> to vector<32x128xf32>
    %31 = arith.mulf %28, %30 : vector<32x128xf32>
    %c0_14 = arith.constant 0 : index
    %c0_15 = arith.constant 0 : index
    %32 = vector.load %arg5[%c0_14, %c0_15] : memref<1x128xf32, #tpu.memory_space<vmem>>, vector<1x128xf32>
    %33 = vector.broadcast %32 : vector<1x128xf32> to vector<32x128xf32>
    %34 = arith.addf %31, %33 : vector<32x128xf32>
    %c0_16 = arith.constant 0 : index
    %c0_17 = arith.constant 0 : index
    %35 = vector.load %arg6[%c0_16, %c0_17] : memref<32x128xf32, #tpu.memory_space<vmem>>, vector<32x128xf32>
    tpu.vector_store %arg6[%c0_16, %c0_17], %34 {strides = array<i32>} : memref<32x128xf32, #tpu.memory_space<vmem>>, vector<32x128xf32>,
    return
  }
  func.func @transform_0(%arg0: i32) -> (i32, i32) {
    %c0_i32 = arith.constant 0 : i32
    %c0_i32_0 = arith.constant 0 : i32
    return %arg0, %c0_i32 : i32, i32
  }
  func.func @transform_1(%arg0: i32) -> (i32, i32) {
    %c0_i32 = arith.constant 0 : i32
    %c0_i32_0 = arith.constant 0 : i32
    %c0_i32_1 = arith.constant 0 : i32
    return %c0_i32, %c0_i32_0 : i32, i32
  }
  func.func @transform_2(%arg0: i32) -> (i32, i32) {
    %c0_i32 = arith.constant 0 : i32
    %c0_i32_0 = arith.constant 0 : i32
    %c0_i32_1 = arith.constant 0 : i32
    return %c0_i32, %c0_i32_0 : i32, i32
  }
  func.func @transform_3(%arg0: i32) -> (i32, i32) {
    %c0_i32 = arith.constant 0 : i32
    %c0_i32_0 = arith.constant 0 : i32
    %c0_i32_1 = arith.constant 0 : i32
    return %c0_i32, %c0_i32_0 : i32, i32
  }
  func.func @transform_4(%arg0: i32) -> (i32, i32) {
    %c0_i32 = arith.constant 0 : i32
    %c0_i32_0 = arith.constant 0 : i32
    %c0_i32_1 = arith.constant 0 : i32
    return %c0_i32, %c0_i32_0 : i32, i32
  }
  func.func @transform_5(%arg0: i32) -> (i32, i32) {
    %c0_i32 = arith.constant 0 : i32
    %c0_i32_0 = arith.constant 0 : i32
    return %arg0, %c0_i32 : i32, i32
  }
}

</mosaic_0001>

<llo_original>
// kernel: overlap_patch_embed.1
$region0: #{overlap_patch_embed.1}
  #allocation0 [shape = 'u32[]', space=smem, size = 0x4, offset = 0x4, fixed_abs, tag = 'smem constant byte address 0x4 - core index']
  #allocation1 [shape = 'u32[72,128]{1,0:T(1,128)}', space=vmem, size = 0x9000, scoped, tag = 'internal scratch']
  %s0 = inlined_call_operand.vmem [shape: f32[32,196], index: 0, kind: input, shape index: {}]
  %s1 = inlined_call_operand.vmem [shape: f32[196,128], index: 1, kind: input, shape index: {}]
  %s2 = inlined_call_operand.vmem [shape: f32[1,128], index: 2, kind: input, shape index: {}]
  %s3 = inlined_call_operand.vmem [shape: f32[1,128], index: 3, kind: input, shape index: {}]
  %s4 = inlined_call_operand.vmem [shape: f32[1,128], index: 4, kind: input, shape index: {}]
  %s5 = inlined_call_operand.hbm [shape: f32[32,128], index: 5, kind: output, shape index: {}]
  %s6 = sld [smem:[#allocation0]]
  $region30: #{overlap_patch_embed.1} parent=0
    _
  %s8 = ssub.s32 1, %s6
  %s9 = scalar_select 0, %s8, %s6
  $region1: #{overlap_patch_embed.1} parent=0
    #allocation2 [shape = 'u8[16384]{0}', space=vmem, size = 0x4000, scoped, tag = 'output window, operand 0, single buffered']
    #allocation3 [shape = 's32[1]{0}', space=sflag, size = 0x4, scoped, tag = 'scoped memory for overlap_patch_embed.1']
    %10 = vsyncpa [#allocation3], 0
    // Predicated region
    $region2: #{overlap_patch_embed.1} parent=1 // pred_check
      _
    $region3: #{overlap_patch_embed.1} parent=1 // pred_check_branch
      %12 = sbr.rel (0) target = $region5
    $region4: #{overlap_patch_embed.1} parent=1 // pred_region
      _
    $region5: #{overlap_patch_embed.1} parent=1 // pred_fallthru
      _
    // Predicated region
    $region6: #{overlap_patch_embed.1} parent=1 // pred_check
      _
    $region7: #{overlap_patch_embed.1} parent=1 // pred_check_branch
      %14 = sbr.rel (0) target = $region9
    $region8: #{overlap_patch_embed.1} parent=1 // pred_region
      _
    $region9: #{overlap_patch_embed.1} parent=1 // pred_fallthru
      _
    // Predicated region
    $region10: #{overlap_patch_embed.1} parent=1 // pred_check
      _
    $region11: #{overlap_patch_embed.1} parent=1 // pred_check_branch
      %16 = sbr.rel (0) target = $region13
    $region12: #{overlap_patch_embed.1} parent=1 // pred_region
      _
    $region13: #{overlap_patch_embed.1} parent=1 // pred_fallthru
      _
    // Predicated region
    $region14: #{overlap_patch_embed.1} parent=1 // pred_check
      _
    $region15: #{overlap_patch_embed.1} parent=1 // pred_check_branch
      %18 = sbr.rel (0) target = $region17
    $region16: #{overlap_patch_embed.1} parent=1 // pred_region
      _
    $region17: #{overlap_patch_embed.1} parent=1 // pred_fallthru
      _
    // Predicated region
    $region18: #{overlap_patch_embed.1} parent=1 // pred_check
      _
    $region19: #{overlap_patch_embed.1} parent=1 // pred_check_branch
      %20 = sbr.rel (0) target = $region21
    $region20: #{overlap_patch_embed.1} parent=1 // pred_region
      _
    $region21: #{overlap_patch_embed.1} parent=1 // pred_fallthru
      _
    %v21 = vld [vmem:[%s0] sm:$0xff]
    %v22 = vld [vmem:[%s0 + $0x8] sm:$0xff]
    %v23 = vld [vmem:[%s0 + $0x10] sm:$0xff]
    %v24 = vld [vmem:[%s0 + $0x18] sm:$0xff]
    %v25 = vld [vmem:[%s0 + $0x20] sm:$0xff]
    %v26 = vld [vmem:[%s0 + $0x28] sm:$0xff]
    %v27 = vld [vmem:[%s0 + $0x30] sm:$0xff]
    %v28 = vld [vmem:[%s0 + $0x38] sm:$0xff]
    %v29 = vld [vmem:[%s1] sm:$0xff]
    %v30 = vld [vmem:[%s1 + $0x8] sm:$0xff]
    %v31 = vld [vmem:[%s1 + $0x10] sm:$0xff]
    %v32 = vld [vmem:[%s1 + $0x18] sm:$0xff]
    %v33 = vld [vmem:[%s1 + $0x20] sm:$0xff]
    %v34 = vld [vmem:[%s1 + $0x28] sm:$0xff]
    %v35 = vld [vmem:[%s1 + $0x30] sm:$0xff]
    %v36 = vld [vmem:[%s1 + $0x38] sm:$0xff]
    %v37 = vld [vmem:[%s1 + $0x40] sm:$0xff]
    %v38 = vld [vmem:[%s1 + $0x48] sm:$0xff]
    %v39 = vld [vmem:[%s1 + $0x50] sm:$0xff]
    %v40 = vld [vmem:[%s1 + $0x58] sm:$0xff]
    %v41 = vld [vmem:[%s1 + $0x60] sm:$0xff]
    %v42 = vld [vmem:[%s1 + $0x68] sm:$0xff]
    %v43 = vld [vmem:[%s1 + $0x70] sm:$0xff]
    %v44 = vld [vmem:[%s1 + $0x78] sm:$0xff]
    %v45 = vld [vmem:[%s1 + $0x80] sm:$0xff]
    %v46 = vld [vmem:[%s1 + $0x88] sm:$0xff]
    %v47 = vld [vmem:[%s1 + $0x90] sm:$0xff]
    %v48 = vld [vmem:[%s1 + $0x98] sm:$0xff]
    %v49 = vld [vmem:[%s1 + $0xa0] sm:$0xff]
    %v50 = vld [vmem:[%s1 + $0xa8] sm:$0xff]
    %v51 = vld [vmem:[%s1 + $0xb0] sm:$0xff]
    %v52 = vld [vmem:[%s1 + $0xb8] sm:$0xff]
    %v53 = vld [vmem:[%s1 + $0xc0] sm:$0xf]
    %v54 = vld [vmem:[%s2] sm:$0x1]
    %v56 = vperm.slane %v54, 0
    %vm58 = vcmask 556032
    %v60 = vsel %vm58, %v22, 0
    %v63 = vsel %vm58, %v24, 0
    %v66 = vsel %vm58, %v26, 0
    %v69 = vsel %vm58, %v28, 0
    %vm71 = vcmask 1043456
    %v73 = vsel %vm71, %v53, 0
    %75 = vmatpush.msra.mxu0 %v44
    %76 = vmatpush.msra.mxu0 %v43
    %77 = vmatpush.msra.mxu0 %v42
    %78 = vmatpush.msra.mxu0 %v41
    %79 = vmatpush.msra.mxu0 %v40
    %80 = vmatpush.msra.mxu0 %v39
    %81 = vmatpush.msra.mxu0 %v38
    %82 = vmatpush.msra.mxu0 %v37
    %83 = vmatpush.msra.mxu0 %v36
    %84 = vmatpush.msra.mxu0 %v35
    %85 = vmatpush.msra.mxu0 %v34
    %86 = vmatpush.msra.mxu0 %v33
    %87 = vmatpush.msra.mxu0 %v32
    %88 = vmatpush.msra.mxu0 %v31
    %89 = vmatpush.msra.mxu0 %v30
    %90 = vmatpush.msra.mxu0 %v29
    %91 = vmatmul.f32.gmra.mxu0 %v21
    %v92 = vpop.f32.mrf.mxu0
    %v93 = vadd.f32 %v56, %v92
    %94 = vmatmul.f32.gmra.mxu0 %v23
    %v95 = vpop.f32.mrf.mxu0
    %v96 = vadd.f32 %v56, %v95
    %97 = vmatmul.f32.gmra.mxu0 %v25
    %v98 = vpop.f32.mrf.mxu0
    %v99 = vadd.f32 %v56, %v98
    %100 = vmatmul.f32.gmra.mxu0 %v27
    %v101 = vpop.f32.mrf.mxu0
    %v102 = vadd.f32 %v56, %v101
    %103 = vdwg.mxu0
    %104 = vmatpush.msra.mxu0 0.0
    %105 = vmatpush.msra.mxu0 0.0
    %106 = vmatpush.msra.mxu0 0.0
    %107 = vmatpush.msra.mxu0 0.0
    %108 = vmatpush.msra.mxu0 0.0
    %109 = vmatpush.msra.mxu0 0.0
    %110 = vmatpush.msra.mxu0 0.0
    %111 = vmatpush.msra.mxu0 %v73
    %112 = vmatpush.msra.mxu0 %v52
    %113 = vmatpush.msra.mxu0 %v51
    %114 = vmatpush.msra.mxu0 %v50
    %115 = vmatpush.msra.mxu0 %v49
    %116 = vmatpush.msra.mxu0 %v48
    %117 = vmatpush.msra.mxu0 %v47
    %118 = vmatpush.msra.mxu0 %v46
    %119 = vmatpush.msra.mxu0 %v45
    %120 = vmatmul.f32.gmra.mxu0 %v60
    %v121 = vpop.f32.mrf.mxu0
    %v122 = vadd.f32 %v93, %v121
    %123 = vmatmul.f32.gmra.mxu0 %v63
    %v124 = vpop.f32.mrf.mxu0
    %v125 = vadd.f32 %v96, %v124
    %126 = vmatmul.f32.gmra.mxu0 %v66
    %v127 = vpop.f32.mrf.mxu0
    %v128 = vadd.f32 %v99, %v127
    %129 = vmatmul.f32.gmra.mxu0 %v69
    %v130 = vpop.f32.mrf.mxu0
    %v131 = vadd.f32 %v102, %v130
    %132 = vdwg.mxu0
    %v133 = vlaneseq
    %v134 = vand.u32 %v133, 127
    %vm135 = vcmp.lt.s32.totalorder %v134, 32
    %v136 = vsel %vm135, %v122, 0.0
    %v137 = vsel %vm135, %v125, 0.0
    %v138 = vsel %vm135, %v128, 0.0
    %v139 = vsel %vm135, %v131, 0.0
    %140 = vadd.xlane.f32.xlu0 %v136
    %v141 = vpop.xlane.xlu0 %140
    %142 = vadd.xlane.f32.xlu0 %v137
    %v143 = vpop.xlane.xlu0 %142
    %144 = vadd.xlane.f32.xlu0 %v138
    %v145 = vpop.xlane.xlu0 %144
    %146 = vadd.xlane.f32.xlu0 %v139
    %v147 = vpop.xlane.xlu0 %146
    %v148 = vmul.f32 %v141, 0.03125
    %v149 = vmul.f32 %v143, 0.03125
    %v150 = vmul.f32 %v145, 0.03125
    %v151 = vmul.f32 %v147, 0.03125
    %v152 = vsub.f32 %v122, %v148
    %v153 = vsub.f32 %v125, %v149
    %v154 = vsub.f32 %v128, %v150
    %v155 = vsub.f32 %v131, %v151
    %v156 = vsel %vm135, %v152, 0.0
    %v157 = vsel %vm135, %v153, 0.0
    %v158 = vsel %vm135, %v154, 0.0
    %v159 = vsel %vm135, %v155, 0.0
    %v160 = vmul.f32 %v156, %v156
    %v161 = vmul.f32 %v157, %v157
    %v162 = vmul.f32 %v158, %v158
    %v163 = vmul.f32 %v159, %v159
    %164 = vadd.xlane.f32.xlu0 %v160
    %v165 = vpop.xlane.xlu0 %164
    %166 = vadd.xlane.f32.xlu0 %v161
    %v167 = vpop.xlane.xlu0 %166
    %168 = vadd.xlane.f32.xlu0 %v162
    %v169 = vpop.xlane.xlu0 %168
    %170 = vadd.xlane.f32.xlu0 %v163
    %v171 = vpop.xlane.xlu0 %170
    %v172 = vmul.f32 %v165, 0.03125
    %v173 = vmul.f32 %v167, 0.03125
    %v174 = vmul.f32 %v169, 0.03125
    %v175 = vmul.f32 %v171, 0.03125
    %v176 = vadd.f32 %v172, 1e-05
    %v177 = vadd.f32 %v173, 1e-05
    %v178 = vadd.f32 %v174, 1e-05
    %v179 = vadd.f32 %v175, 1e-05
    %v180 = vrsqrt.pop %v176
    %v181 = vmul.f32 %v180, %v176
    %v182 = vmul.f32 %v181, %v180
    %v183 = vmul.f32 0.5, %v182
    %v184 = vsub.f32 1.5, %v183
    %v185 = vmul.f32 %v180, %v184
    %vm186 = vweird.f32 %v176
    %vm187 = vweird.f32 %v180
    %vm188 = vmor %vm186, %vm187
    %v189 = vsel %vm188, %v180, %v185
    %v190 = vrsqrt.pop %v177
    %v191 = vmul.f32 %v190, %v177
    %v192 = vmul.f32 %v191, %v190
    %v193 = vmul.f32 0.5, %v192
    %v194 = vsub.f32 1.5, %v193
    %v195 = vmul.f32 %v190, %v194
    %vm196 = vweird.f32 %v177
    %vm197 = vweird.f32 %v190
    %vm198 = vmor %vm196, %vm197
    %v199 = vsel %vm198, %v190, %v195
    %v200 = vrsqrt.pop %v178
    %v201 = vmul.f32 %v200, %v178
    %v202 = vmul.f32 %v201, %v200
    %v203 = vmul.f32 0.5, %v202
    %v204 = vsub.f32 1.5, %v203
    %v205 = vmul.f32 %v200, %v204
    %vm206 = vweird.f32 %v178
    %vm207 = vweird.f32 %v200
    %vm208 = vmor %vm206, %vm207
    %v209 = vsel %vm208, %v200, %v205
    %v210 = vrsqrt.pop %v179
    %v211 = vmul.f32 %v210, %v179
    %v212 = vmul.f32 %v211, %v210
    %v213 = vmul.f32 0.5, %v212
    %v214 = vsub.f32 1.5, %v213
    %v215 = vmul.f32 %v210, %v214
    %vm216 = vweird.f32 %v179
    %vm217 = vweird.f32 %v210
    %vm218 = vmor %vm216, %vm217
    %v219 = vsel %vm218, %v210, %v215
    %v220 = vmul.f32 %v156, %v189
    %v221 = vmul.f32 %v157, %v199
    %v222 = vmul.f32 %v158, %v209
    %v223 = vmul.f32 %v159, %v219
    %v224 = vld [vmem:[%s3] sm:$0x1]
    %v226 = vperm.slane %v224, 0
    %v228 = vmul.f32 %v220, %v226
    %v229 = vmul.f32 %v221, %v226
    %v230 = vmul.f32 %v222, %v226
    %v231 = vmul.f32 %v223, %v226
    %v232 = vld [vmem:[%s4] sm:$0x1]
    %v234 = vperm.slane %v232, 0
    %v236 = vadd.f32 %v228, %v234
    %v237 = vadd.f32 %v229, %v234
    %v238 = vadd.f32 %v230, %v234
    %v239 = vadd.f32 %v231, %v234
    %240 = vst [vmem:[#allocation2] sm:$0xff] %v236
    %241 = vst [vmem:[#allocation2 + $0x8] sm:$0xff] %v237
    %242 = vst [vmem:[#allocation2 + $0x10] sm:$0xff] %v238
    %243 = vst [vmem:[#allocation2 + $0x18] sm:$0xff] %v239
    // Predicated region
    $region22: #{overlap_patch_embed.1} parent=1 // pred_check
      _
    $region23: #{overlap_patch_embed.1} parent=1 // pred_check_branch
      %245 = sbr.rel (0) target = $region25
    $region24: #{overlap_patch_embed.1} parent=1 // pred_region
      %247 = vsyncadd [#allocation3], 0
      %s248 = sshll.u32 [#allocation2], 4
      %s249 = int_to_ptr.vmem [resolvable:$true] %s248
      %s250 = sshll.u32 %s5, 4
      %s251 = int_to_ptr.hbm [resolvable:$true] %s250
      %256 = dma.vmem_to_hbm [thread:$0]  %s249, 512, %s251, [#allocation3], 128, 128, 8
    $region25: #{overlap_patch_embed.1} parent=1 // pred_fallthru
      _
    // Predicated region
    $region26: #{overlap_patch_embed.1} parent=1 // pred_check
      _
    $region27: #{overlap_patch_embed.1} parent=1 // pred_check_branch
      %258 = sbr.rel (0) target = $region29
    $region28: #{overlap_patch_embed.1} parent=1 // pred_region
      %260 = dma.done [#allocation3], 512
    $region29: #{overlap_patch_embed.1} parent=1 // pred_fallthru
      _
    %261 = vsyncpa [#allocation3], 1

</llo_original>
